<compile_context>
chip_gen: v5e
topology: v5e:2x2
jax: 0.10.0
libtpu: 0.0.40
codegen_flags: <defaults>
</compile_context>

<pallas_src>
import functools

import jax
import jax.numpy as jnp
from jax import lax
from jax.experimental import pallas as pl
from jax.experimental.pallas import tpu as pltpu

# Contract dim 1 of A with dim 1 of B  ==  A @ B.T without materializing B.T
# (used only for the q @ k^T score matmul; weights are pre-transposed).
_DN_RHS_T = (((1,), (1,)), ((), ()))

# Conservative scoped-VMEM request: fits under v7x's 64 MiB physical VMEM,
# raises the 16/32 MiB defaults on v5e/v6e.
_VMEM_LIMIT_BYTES = 48 * 1024 * 1024


# ----------------------------------------------------------------------------
# One-time parameter preparation (host side, NOT per forward).
# ----------------------------------------------------------------------------
def prepare_params(torch_params):
    """Transpose PyTorch (d_out, d_in) Linear weights to (d_in, d_out) once."""
    p = torch_params
    return {
        "w_qs_wt": jnp.asarray(p["w_qs_w"]).T, "w_qs_b": jnp.asarray(p["w_qs_b"]),
        "w_ks_wt": jnp.asarray(p["w_ks_w"]).T, "w_ks_b": jnp.asarray(p["w_ks_b"]),
        "w_vs_wt": jnp.asarray(p["w_vs_w"]).T, "w_vs_b": jnp.asarray(p["w_vs_b"]),
        "fc_wt": jnp.asarray(p["fc_w"]).T, "fc_b": jnp.asarray(p["fc_b"]),
        "ln_g": jnp.asarray(p["ln_g"]), "ln_b": jnp.asarray(p["ln_b"]),
    }


# ----------------------------------------------------------------------------
# Kernel 1: fused, row-tiled projections   y_j = (x @ Wt_j + b_j) * scale_j
# Used once with 3 weight/bias pairs for the self-attention Q/K/V projection
# (x read from HBM once, weights resident across the row grid), or with a
# single pair per input in the cross-attention fallback.
# ----------------------------------------------------------------------------
def _fused_proj_kernel(x_ref, *refs, n_out, scales):
    x = x_ref[...]                               # loaded once, reused n_out times
    for j in range(n_out):
        wt_ref = refs[2 * j]
        b_ref = refs[2 * j + 1]
        o_ref = refs[2 * n_out + j]
        y = jnp.dot(x, wt_ref[...], preferred_element_type=jnp.float32)
        y = y + b_ref[...]
        if scales[j] != 1.0:                     # static branch (folded q-scale)
            y = y * jnp.float32(scales[j])
        o_ref[...] = y.astype(o_ref.dtype)


def fused_row_projections(x2d, weights_and_biases, *, scales=None,
                          out_dtype=jnp.float32, row_tile=512):
    """Compute [(x @ Wt_j + b_j) * scale_j] for pre-transposed Wt_j: (d_in, d_out)."""
    n, d_in = x2d.shape
    m = len(weights_and_biases)
    if scales is None:
        scales = (1.0,) * m
    tm = n if n <= row_tile else row_tile

    in_specs = [pl.BlockSpec((tm, d_in), lambda i: (i, 0))]
    args = [x2d]
    out_shapes, out_specs = [], []
    for wt, b in weights_and_biases:
        d_out = wt.shape[1]
        # Resident weight / bias blocks (constant index map).
        # TODO(synk): pipeline_mode=pl.Buffered(1) here (single-buffer constants).
        in_specs.append(pl.BlockSpec((d_in, d_out), lambda i: (0, 0)))
        in_specs.append(pl.BlockSpec((1, d_out), lambda i: (0, 0)))
        args.extend([wt, b.reshape(1, d_out)])
        out_shapes.append(jax.ShapeDtypeStruct((n, d_out), out_dtype))
        out_specs.append(pl.BlockSpec((tm, d_out), lambda i: (i, 0)))

    kern = functools.partial(_fused_proj_kernel, n_out=m,
                             scales=tuple(float(s) for s in scales))
    outs = pl.pallas_call(
        kern,
        out_shape=tuple(out_shapes),
        grid=(pl.cdiv(n, tm),),
        in_specs=in_specs,
        out_specs=tuple(out_specs),
        compiler_params=pltpu.CompilerParams(
            dimension_semantics=("parallel",),
            vmem_limit_bytes=_VMEM_LIMIT_BYTES),
    )(*args)
    return list(outs)


# ----------------------------------------------------------------------------
# Kernel 2: scaled dot-product attention.
# Grid = (batch, head_group).  Inputs are lane-dense 3-D (B, L, n_head*d);
# each step handles `heads` heads via static column slices and emits ONE
# lane-dense (len_q, heads*d_v) store.  The additive mask bias is built
# in-kernel from an int8 mask.  q is already pre-scaled by 1/temperature.
# ----------------------------------------------------------------------------
def _attention_kernel(q_ref, k_ref, v_ref, m_ref, o_ref, *a_refs,
                      heads, d_k, d_v, mask_value):
    q = q_ref[0]                                  # (len_q, heads*d_k), pre-scaled
    k = k_ref[0]                                  # (len_k, heads*d_k)
    v = v_ref[0]                                  # (len_k, heads*d_v)
    # Finite bias (PyTorch -inf would NaN fully-masked rows); built in-kernel.
    bias = jnp.where(m_ref[0] != 0, jnp.float32(mask_value), jnp.float32(0.0))
    a_ref = a_refs[0] if a_refs else None

    outs = []
    # TODO(synk): switch to lax.fori_loop + VMEM scratch accumulator when the
    # per-step head count is large (bounds vreg live ranges).
    for h in range(heads):
        qh = q[:, h * d_k:(h + 1) * d_k]          # static lane-column slices
        kh = k[:, h * d_k:(h + 1) * d_k]
        vh = v[:, h * d_v:(h + 1) * d_v]

        # q @ k^T on the MXU with f32 accumulation (operands may be bf16).
        s = lax.dot_general(qh, kh, _DN_RHS_T,
                            preferred_element_type=jnp.float32)
        s = s + bias
        s_max = jnp.max(s, axis=-1, keepdims=True)
        e = jnp.exp(s - s_max)
        # Exact f32 division: pl.reciprocal(approx=True) caused the previous
        # out-of-tolerance mismatch.
        p = e / jnp.sum(e, axis=-1, keepdims=True)

        if a_ref is not None:
            a_ref[h, 0] = p                       # full (len_q, len_k) slab store
        outs.append(jnp.dot(p.astype(v.dtype), vh,
                            preferred_element_type=jnp.float32))

    # Single lane-dense store for all heads of this step.
    o_ref[0] = jnp.concatenate(outs, axis=-1).astype(o_ref.dtype)


def attention(q3, k3, v3, mask_i8, *, n_head, d_k, d_v, head_block=None,
              return_attn=False, mask_value=-1e30):
    """q3/k3: (B, L, n_head*d_k); v3: (B, Lk, n_head*d_v); mask_i8: (B, Lq, Lk) int8."""
    sz_b, len_q, _ = q3.shape
    len_k = k3.shape[1]
    hb = n_head if head_block is None else head_block
    assert n_head % hb == 0, "head_block must divide n_head"
    n_groups = n_head // hb

    kern = functools.partial(_attention_kernel, heads=hb, d_k=d_k, d_v=d_v,
                             mask_value=float(mask_value))
    in_specs = [
        pl.BlockSpec((1, len_q, hb * d_k), lambda b, g: (b, 0, g)),
        pl.BlockSpec((1, len_k, hb * d_k), lambda b, g: (b, 0, g)),
        pl.BlockSpec((1, len_k, hb * d_v), lambda b, g: (b, 0, g)),
        pl.BlockSpec((1, len_q, len_k), lambda b, g: (b, 0, 0)),
    ]
    out_shape = [jax.ShapeDtypeStruct((sz_b, len_q, n_head * d_v), jnp.float32)]
    out_specs = [pl.BlockSpec((1, len_q, hb * d_v), lambda b, g: (b, 0, g))]
    if return_attn:
        out_shape.append(
            jax.ShapeDtypeStruct((n_head, sz_b, len_q, len_k), jnp.float32))
        out_specs.append(
            pl.BlockSpec((hb, 1, len_q, len_k), lambda b, g: (g, b, 0, 0)))

    res = pl.pallas_call(
        kern,
        out_shape=tuple(out_shape),
        grid=(sz_b, n_groups),
        in_specs=in_specs,
        out_specs=tuple(out_specs),
        compiler_params=pltpu.CompilerParams(
            dimension_semantics=("parallel", "parallel"),
            vmem_limit_bytes=_VMEM_LIMIT_BYTES),
    )(q3, k3, v3, mask_i8)
    if return_attn:
        return res[0], res[1]
    return res[0], None


# ----------------------------------------------------------------------------
# Kernel 3: output projection + residual add + LayerNorm (fused, row-tiled)
# ----------------------------------------------------------------------------
def _fc_residual_ln_kernel(x_ref, wt_ref, b_ref, res_ref, g_ref, beta_ref,
                           o_ref, *, eps):
    y = jnp.dot(x_ref[...], wt_ref[...], preferred_element_type=jnp.float32)
    y = y + b_ref[...] + res_ref[...]
    mean = jnp.mean(y, axis=-1, keepdims=True)
    var = jnp.mean(jnp.square(y - mean), axis=-1, keepdims=True)
    out = (y - mean) * lax.rsqrt(var + eps) * g_ref[...] + beta_ref[...]
    o_ref[...] = out.astype(o_ref.dtype)


def fc_residual_layernorm(x2d, fc_wt, fc_b, residual2d, gamma, beta, *,
                          eps=1e-5, row_tile=512):
    n, d_in = x2d.shape
    d_model = fc_wt.shape[1]
    tm = n if n <= row_tile else row_tile
    kern = functools.partial(_fc_residual_ln_kernel, eps=float(eps))
    return pl.pallas_call(
        kern,
        out_shape=jax.ShapeDtypeStruct((n, d_model), jnp.float32),
        grid=(pl.cdiv(n, tm),),
        in_specs=[
            pl.BlockSpec((tm, d_in), lambda i: (i, 0)),
            pl.BlockSpec((d_in, d_model), lambda i: (0, 0)),
            pl.BlockSpec((1, d_model), lambda i: (0, 0)),
            pl.BlockSpec((tm, d_model), lambda i: (i, 0)),
            pl.BlockSpec((1, d_model), lambda i: (0, 0)),
            pl.BlockSpec((1, d_model), lambda i: (0, 0)),
        ],
        out_specs=pl.BlockSpec((tm, d_model), lambda i: (i, 0)),
        compiler_params=pltpu.CompilerParams(
            dimension_semantics=("parallel",),
            vmem_limit_bytes=_VMEM_LIMIT_BYTES),
    )(x2d, fc_wt, fc_b.reshape(1, d_model), residual2d,
      gamma.reshape(1, d_model), beta.reshape(1, d_model))


# ----------------------------------------------------------------------------
# MultiHeadAttention forward (glue is free reshapes only).
# ----------------------------------------------------------------------------
def multi_head_attention(params, q, k, v, mask=None, *, n_head, d_k, d_v,
                         mxu_dtype=jnp.bfloat16, head_block=None,
                         row_tile=512, qkv_same=None, return_attn=False):
    sz_b, len_q, d_model = q.shape
    len_k = k.shape[1]
    residual = q
    inv_temperature = 1.0 / (float(d_k) ** 0.5)

    if qkv_same is None:
        qkv_same = (q is k) and (k is v)   # pass qkv_same=True explicitly under jit

    if qkv_same:
        # Self-attention: one fused pallas_call reads x from HBM once.
        q_p, k_p, v_p = fused_row_projections(
            q.reshape(sz_b * len_q, d_model),
            [(params["w_qs_wt"], params["w_qs_b"]),
             (params["w_ks_wt"], params["w_ks_b"]),
             (params["w_vs_wt"], params["w_vs_b"])],
            scales=(inv_temperature, 1.0, 1.0),
            out_dtype=mxu_dtype, row_tile=row_tile)
    else:
        (q_p,) = fused_row_projections(
            q.reshape(sz_b * len_q, d_model),
            [(params["w_qs_wt"], params["w_qs_b"])],
            scales=(inv_temperature,), out_dtype=mxu_dtype, row_tile=row_tile)
        (k_p,) = fused_row_projections(
            k.reshape(sz_b * len_k, d_model),
            [(params["w_ks_wt"], params["w_ks_b"])],
            out_dtype=mxu_dtype, row_tile=row_tile)
        (v_p,) = fused_row_projections(
            v.reshape(sz_b * len_k, d_model),
            [(params["w_vs_wt"], params["w_vs_b"])],
            out_dtype=mxu_dtype, row_tile=row_tile)

    # Head split stays a free reshape to the lane-dense 3-D layout.
    q3 = q_p.reshape(sz_b, len_q, n_head * d_k)
    k3 = k_p.reshape(sz_b, len_k, n_head * d_k)
    v3 = v_p.reshape(sz_b, len_k, n_head * d_v)

    if mask is None:
        mask_i8 = jnp.zeros((sz_b, len_q, len_k), jnp.int8)
    else:
        mask_i8 = jnp.broadcast_to(mask, (sz_b, len_q, len_k)).astype(jnp.int8)

    out3, attn = attention(q3, k3, v3, mask_i8, n_head=n_head, d_k=d_k, d_v=d_v,
                           head_block=head_block, return_attn=return_attn)

    # (B, Lq, n_head*d_v) is already the layout the fc expects.
    out2d = out3.reshape(sz_b * len_q, n_head * d_v)
    out = fc_residual_layernorm(out2d, params["fc_wt"], params["fc_b"],
                                residual.reshape(sz_b * len_q, d_model),
                                params["ln_g"], params["ln_b"],
                                row_tile=row_tile)
    out = out.reshape(sz_b, len_q, d_model)
    if return_attn:
        # (n_head, B, Lq, Lk) -> (n_head*B, Lq, Lk): PyTorch head-major layout.
        attn = attn.reshape(n_head * sz_b, len_q, len_k)
    return out, attn


# ----------------------------------------------------------------------------
# Pure-JAX reference.  mxu_dtype=float32 reproduces the PyTorch f32 forward;
# mxu_dtype=bfloat16 applies the same casts as the kernels' bf16-MXU path.
# ----------------------------------------------------------------------------
def mha_reference(torch_params, q, k, v, mask, *, n_head, d_k, d_v,
                  mxu_dtype=jnp.float32):
    sz_b, len_q, d_model = q.shape
    len_k = k.shape[1]
    residual = q
    dt = mxu_dtype
    inv_t = 1.0 / (float(d_k) ** 0.5)

    def lin(x, w, b):
        return x @ w.T + b

    def to_heads(x, length, d):
        x = x.reshape(sz_b, length, n_head, d)
        return jnp.transpose(x, (2, 0, 1, 3)).reshape(n_head * sz_b, length, d)

    qh = to_heads((lin(q, torch_params["w_qs_w"], torch_params["w_qs_b"]) * inv_t
                   ).astype(dt), len_q, d_k)
    kh = to_heads(lin(k, torch_params["w_ks_w"], torch_params["w_ks_b"]
                      ).astype(dt), len_k, d_k)
    vh = to_heads(lin(v, torch_params["w_vs_w"], torch_params["w_vs_b"]
                      ).astype(dt), len_k, d_v)

    mask_rep = jnp.tile(mask, (n_head, 1, 1))
    s = jnp.einsum("bqd,bkd->bqk", qh, kh, preferred_element_type=jnp.float32)
    s = jnp.where(mask_rep, -jnp.inf, s)
    attn = jax.nn.softmax(s, axis=-1)
    out = jnp.einsum("bqk,bkd->bqd", attn.astype(dt), vh,
                     preferred_element_type=jnp.float32)

    out = out.reshape(n_head, sz_b, len_q, d_v)
    out = jnp.transpose(out, (1, 2, 0, 3)).reshape(sz_b, len_q, n_head * d_v)
    out = out @ torch_params["fc_w"].T + torch_params["fc_b"] + residual
    mean = jnp.mean(out, axis=-1, keepdims=True)
    var = jnp.mean((out - mean) ** 2, axis=-1, keepdims=True)
    out = (out - mean) / jnp.sqrt(var + 1e-5) * torch_params["ln_g"] \
        + torch_params["ln_b"]
    return out, attn


if __name__ == "__main__":
    # Small deterministic configuration.
    n_head, d_model, d_k, d_v = 4, 32, 8, 8
    sz_b, seq = 2, 8

    key = jax.random.PRNGKey(0)
    ks = jax.random.split(key, 10)

    std_qk = (2.0 / (d_model + d_k)) ** 0.5
    std_v = (2.0 / (d_model + d_v)) ** 0.5
    std_fc = (2.0 / (n_head * d_v + d_model)) ** 0.5  # xavier_normal

    torch_params = {
        "w_qs_w": std_qk * jax.random.normal(ks[0], (n_head * d_k, d_model), jnp.float32),
        "w_qs_b": 0.01 * jax.random.normal(ks[1], (n_head * d_k,), jnp.float32),
        "w_ks_w": std_qk * jax.random.normal(ks[2], (n_head * d_k, d_model), jnp.float32),
        "w_ks_b": 0.01 * jax.random.normal(ks[3], (n_head * d_k,), jnp.float32),
        "w_vs_w": std_v * jax.random.normal(ks[4], (n_head * d_v, d_model), jnp.float32),
        "w_vs_b": 0.01 * jax.random.normal(ks[5], (n_head * d_v,), jnp.float32),
        "fc_w": std_fc * jax.random.normal(ks[6], (d_model, n_head * d_v), jnp.float32),
        "fc_b": 0.01 * jax.random.normal(ks[7], (d_model,), jnp.float32),
        "ln_g": jnp.ones((d_model,), jnp.float32),
        "ln_b": jnp.zeros((d_model,), jnp.float32),
    }
    params = prepare_params(torch_params)   # one-time weight transpose

    q = jax.random.normal(ks[8], (sz_b, seq, d_model), jnp.float32)

    # Key-padding style mask: mask the last 2 key positions (True = masked).
    key_pad = jnp.arange(seq) >= (seq - 2)
    mask = jnp.broadcast_to(key_pad[None, None, :], (sz_b, seq, seq))

    # 1) Exact path (f32 MXU operands) vs the PyTorch-faithful f32 reference.
    out32, attn32 = multi_head_attention(
        params, q, q, q, mask, n_head=n_head, d_k=d_k, d_v=d_v,
        mxu_dtype=jnp.float32, qkv_same=True, return_attn=True)
    jax.block_until_ready((out32, attn32))
    out_ref, attn_ref = mha_reference(torch_params, q, q, q, mask,
                                      n_head=n_head, d_k=d_k, d_v=d_v)
    assert jnp.allclose(out32, out_ref, atol=2e-3, rtol=2e-3), "f32 output mismatch"
    assert jnp.allclose(attn32, attn_ref, atol=2e-3, rtol=2e-3), "f32 attn mismatch"

    # 2) Default bf16-MXU path vs the precision-matched reference.
    out_bf, attn_bf = multi_head_attention(
        params, q, q, q, mask, n_head=n_head, d_k=d_k, d_v=d_v,
        qkv_same=True, return_attn=True)           # mxu_dtype=bf16 default
    jax.block_until_ready((out_bf, attn_bf))
    out_refb, attn_refb = mha_reference(torch_params, q, q, q, mask,
                                        n_head=n_head, d_k=d_k, d_v=d_v,
                                        mxu_dtype=jnp.bfloat16)
    assert jnp.allclose(out_bf, out_refb, atol=2e-2, rtol=2e-2), "bf16 output mismatch"
    assert jnp.allclose(attn_bf, attn_refb, atol=2e-2, rtol=2e-2), "bf16 attn mismatch"

    print("KERNEL_OK")
</pallas_src>

<mosaic_0001>
module attributes {stable_mosaic.version = 11 : i64} {
  func.func @_fused_proj_kernel(%arg0: i32, %arg1: memref<16x32xf32, #tpu.memory_space<vmem>>, %arg2: memref<32x32xf32, #tpu.memory_space<vmem>>, %arg3: memref<1x32xf32, #tpu.memory_space<vmem>>, %arg4: memref<32x32xf32, #tpu.memory_space<vmem>>, %arg5: memref<1x32xf32, #tpu.memory_space<vmem>>, %arg6: memref<32x32xf32, #tpu.memory_space<vmem>>, %arg7: memref<1x32xf32, #tpu.memory_space<vmem>>, %arg8: memref<16x32xf32, #tpu.memory_space<vmem>>, %arg9: memref<16x32xf32, #tpu.memory_space<vmem>>, %arg10: memref<16x32xf32, #tpu.memory_space<vmem>>) attributes {dimension_semantics = [#tpu.dimension_semantics<parallel>], iteration_bounds = array<i64: 1>, scalar_prefetch = 0 : i64, scratch_operands = 0 : i64, tpu.core_type = #tpu.core_type<tc>, window_params = [{transform_indices = @transform_0, window_bounds = array<i64: 16, 32>}, {pipeline_mode = #tpu.pipeline_mode<synchronous>, transform_indices = @transform_1, window_bounds = array<i64: 32, 32>}, {pipeline_mode = #tpu.pipeline_mode<synchronous>, transform_indices = @transform_2, window_bounds = array<i64: 1, 32>}, {pipeline_mode = #tpu.pipeline_mode<synchronous>, transform_indices = @transform_3, window_bounds = array<i64: 32, 32>}, {pipeline_mode = #tpu.pipeline_mode<synchronous>, transform_indices = @transform_4, window_bounds = array<i64: 1, 32>}, {pipeline_mode = #tpu.pipeline_mode<synchronous>, transform_indices = @transform_5, window_bounds = array<i64: 32, 32>}, {pipeline_mode = #tpu.pipeline_mode<synchronous>, transform_indices = @transform_6, window_bounds = array<i64: 1, 32>}, {transform_indices = @transform_7, window_bounds = array<i64: 16, 32>}, {transform_indices = @transform_8, window_bounds = array<i64: 16, 32>}, {transform_indices = @transform_9, window_bounds = array<i64: 16, 32>}]} {
    %c0 = arith.constant 0 : index
    %c0_0 = arith.constant 0 : index
    %0 = vector.load %arg1[%c0, %c0_0] : memref<16x32xf32, #tpu.memory_space<vmem>>, vector<16x32xf32>
    %c0_1 = arith.constant 0 : index
    %c0_2 = arith.constant 0 : index
    %1 = vector.load %arg2[%c0_1, %c0_2] : memref<32x32xf32, #tpu.memory_space<vmem>>, vector<32x32xf32>
    %cst = arith.constant dense<0.000000e+00> : vector<16x32xf32>
    %2 = tpu.matmul %0, %1, %cst {dimension_numbers = #tpu.dot_dimension_numbers<[1], [0], [0], [1], [0, 0, 1, 1], [], []>} : vector<16x32xf32>, vector<32x32xf32>, vector<16x32xf32> -> vector<16x32xf32>
    %c0_3 = arith.constant 0 : index
    %c0_4 = arith.constant 0 : index
    %3 = vector.load %arg3[%c0_3, %c0_4] : memref<1x32xf32, #tpu.memory_space<vmem>>, vector<1x32xf32>
    %4 = vector.broadcast %3 : vector<1x32xf32> to vector<16x32xf32>
    %5 = arith.addf %2, %4 : vector<16x32xf32>
    %cst_5 = arith.constant 0.353553385 : f32
    %6 = vector.broadcast %cst_5 : f32 to vector<16x32xf32>
    %7 = arith.mulf %5, %6 : vector<16x32xf32>
    %c0_6 = arith.constant 0 : index
    %c0_7 = arith.constant 0 : index
    %8 = vector.load %arg8[%c0_6, %c0_7] : memref<16x32xf32, #tpu.memory_space<vmem>>, vector<16x32xf32>
    tpu.vector_store %arg8[%c0_6, %c0_7], %7 {strides = array<i32>} : memref<16x32xf32, #tpu.memory_space<vmem>>, vector<16x32xf32>,
    %c0_8 = arith.constant 0 : index
    %c0_9 = arith.constant 0 : index
    %9 = vector.load %arg4[%c0_8, %c0_9] : memref<32x32xf32, #tpu.memory_space<vmem>>, vector<32x32xf32>
    %cst_10 = arith.constant dense<0.000000e+00> : vector<16x32xf32>
    %10 = tpu.matmul %0, %9, %cst_10 {dimension_numbers = #tpu.dot_dimension_numbers<[1], [0], [0], [1], [0, 0, 1, 1], [], []>} : vector<16x32xf32>, vector<32x32xf32>, vector<16x32xf32> -> vector<16x32xf32>
    %c0_11 = arith.constant 0 : index
    %c0_12 = arith.constant 0 : index
    %11 = vector.load %arg5[%c0_11, %c0_12] : memref<1x32xf32, #tpu.memory_space<vmem>>, vector<1x32xf32>
    %12 = vector.broadcast %11 : vector<1x32xf32> to vector<16x32xf32>
    %13 = arith.addf %10, %12 : vector<16x32xf32>
    %c0_13 = arith.constant 0 : index
    %c0_14 = arith.constant 0 : index
    %14 = vector.load %arg9[%c0_13, %c0_14] : memref<16x32xf32, #tpu.memory_space<vmem>>, vector<16x32xf32>
    tpu.vector_store %arg9[%c0_13, %c0_14], %13 {strides = array<i32>} : memref<16x32xf32, #tpu.memory_space<vmem>>, vector<16x32xf32>,
    %c0_15 = arith.constant 0 : index
    %c0_16 = arith.constant 0 : index
    %15 = vector.load %arg6[%c0_15, %c0_16] : memref<32x32xf32, #tpu.memory_space<vmem>>, vector<32x32xf32>
    %cst_17 = arith.constant dense<0.000000e+00> : vector<16x32xf32>
    %16 = tpu.matmul %0, %15, %cst_17 {dimension_numbers = #tpu.dot_dimension_numbers<[1], [0], [0], [1], [0, 0, 1, 1], [], []>} : vector<16x32xf32>, vector<32x32xf32>, vector<16x32xf32> -> vector<16x32xf32>
    %c0_18 = arith.constant 0 : index
    %c0_19 = arith.constant 0 : index
    %17 = vector.load %arg7[%c0_18, %c0_19] : memref<1x32xf32, #tpu.memory_space<vmem>>, vector<1x32xf32>
    %18 = vector.broadcast %17 : vector<1x32xf32> to vector<16x32xf32>
    %19 = arith.addf %16, %18 : vector<16x32xf32>
    %c0_20 = arith.constant 0 : index
    %c0_21 = arith.constant 0 : index
    %20 = vector.load %arg10[%c0_20, %c0_21] : memref<16x32xf32, #tpu.memory_space<vmem>>, vector<16x32xf32>
    tpu.vector_store %arg10[%c0_20, %c0_21], %19 {strides = array<i32>} : memref<16x32xf32, #tpu.memory_space<vmem>>, vector<16x32xf32>,
    return
  }
  func.func @transform_0(%arg0: i32) -> (i32, i32) {
    %c0_i32 = arith.constant 0 : i32
    %c0_i32_0 = arith.constant 0 : i32
    return %arg0, %c0_i32 : i32, i32
  }
  func.func @transform_1(%arg0: i32) -> (i32, i32) {
    %c0_i32 = arith.constant 0 : i32
    %c0_i32_0 = arith.constant 0 : i32
    %c0_i32_1 = arith.constant 0 : i32
    return %c0_i32, %c0_i32_0 : i32, i32
  }
  func.func @transform_2(%arg0: i32) -> (i32, i32) {
    %c0_i32 = arith.constant 0 : i32
    %c0_i32_0 = arith.constant 0 : i32
    %c0_i32_1 = arith.constant 0 : i32
    return %c0_i32, %c0_i32_0 : i32, i32
  }
  func.func @transform_3(%arg0: i32) -> (i32, i32) {
    %c0_i32 = arith.constant 0 : i32
    %c0_i32_0 = arith.constant 0 : i32
    %c0_i32_1 = arith.constant 0 : i32
    return %c0_i32, %c0_i32_0 : i32, i32
  }
  func.func @transform_4(%arg0: i32) -> (i32, i32) {
    %c0_i32 = arith.constant 0 : i32
    %c0_i32_0 = arith.constant 0 : i32
    %c0_i32_1 = arith.constant 0 : i32
    return %c0_i32, %c0_i32_0 : i32, i32
  }
  func.func @transform_5(%arg0: i32) -> (i32, i32) {
    %c0_i32 = arith.constant 0 : i32
    %c0_i32_0 = arith.constant 0 : i32
    %c0_i32_1 = arith.constant 0 : i32
    return %c0_i32, %c0_i32_0 : i32, i32
  }
  func.func @transform_6(%arg0: i32) -> (i32, i32) {
    %c0_i32 = arith.constant 0 : i32
    %c0_i32_0 = arith.constant 0 : i32
    %c0_i32_1 = arith.constant 0 : i32
    return %c0_i32, %c0_i32_0 : i32, i32
  }
  func.func @transform_7(%arg0: i32) -> (i32, i32) {
    %c0_i32 = arith.constant 0 : i32
    %c0_i32_0 = arith.constant 0 : i32
    return %arg0, %c0_i32 : i32, i32
  }
  func.func @transform_8(%arg0: i32) -> (i32, i32) {
    %c0_i32 = arith.constant 0 : i32
    %c0_i32_0 = arith.constant 0 : i32
    return %arg0, %c0_i32 : i32, i32
  }
  func.func @transform_9(%arg0: i32) -> (i32, i32) {
    %c0_i32 = arith.constant 0 : i32
    %c0_i32_0 = arith.constant 0 : i32
    return %arg0, %c0_i32 : i32, i32
  }
}

</mosaic_0001>

<llo_original>
// kernel: tpu_custom_call.1
$region0: #{tpu_custom_call.1}
  #allocation0 [shape = 'u32[]', space=smem, size = 0x4, offset = 0x4, fixed_abs, tag = 'smem constant byte address 0x4 - core index']
  #allocation1 [shape = 'u32[72,128]{1,0:T(1,128)}', space=vmem, size = 0x9000, scoped, tag = 'internal scratch']
  %s0 = inlined_call_operand.hbm [shape: f32[16,32], index: 0, kind: input, shape index: {}]
  %s1 = inlined_call_operand.hbm [shape: f32[32,32], index: 1, kind: input, shape index: {}]
  %s2 = inlined_call_operand.vmem [shape: f32[1,32], index: 2, kind: input, shape index: {}]
  %s3 = inlined_call_operand.hbm [shape: f32[32,32], index: 3, kind: input, shape index: {}]
  %s4 = inlined_call_operand.vmem [shape: f32[1,32], index: 4, kind: input, shape index: {}]
  %s5 = inlined_call_operand.hbm [shape: f32[32,32], index: 5, kind: input, shape index: {}]
  %s6 = inlined_call_operand.vmem [shape: f32[1,32], index: 6, kind: input, shape index: {}]
  %s7 = inlined_call_operand.hbm [shape: f32[16,32], index: 7, kind: output, shape index: {0}]
  %s8 = inlined_call_operand.hbm [shape: f32[16,32], index: 8, kind: output, shape index: {1}]
  %s9 = inlined_call_operand.hbm [shape: f32[16,32], index: 9, kind: output, shape index: {2}]
  %10 = xla_tuple %s7, %s8, %s9
  %s11 = sld [smem:[#allocation0]]
  $region70: #{tpu_custom_call.1} parent=0
    _
  %s13 = ssub.s32 1, %s11
  %s14 = scalar_select 0, %s13, %s11
  $region1: #{tpu_custom_call.1} parent=0
    #allocation2 [shape = 'u8[8192]{0}', space=vmem, size = 0x2000, scoped, tag = 'input window, operand 0, single buffered']
    #allocation3 [shape = 's32[1]{0}', space=sflag, size = 0x4, scoped, tag = 'scoped memory for tpu_custom_call.1']
    #allocation4 [shape = 's32[1]{0}', space=sflag, size = 0x4, scoped, tag = 'scoped memory for tpu_custom_call.1']
    #allocation5 [shape = 'u8[16384]{0}', space=vmem, size = 0x4000, scoped, tag = 'input window, operand 1, single buffered']
    #allocation6 [shape = 's32[1]{0}', space=sflag, size = 0x4, scoped, tag = 'scoped memory for tpu_custom_call.1']
    #allocation7 [shape = 'u8[16384]{0}', space=vmem, size = 0x4000, scoped, tag = 'input window, operand 3, single buffered']
    #allocation8 [shape = 'u8[16384]{0}', space=vmem, size = 0x4000, scoped, tag = 'input window, operand 5, single buffered']
    #allocation9 [shape = 's32[1]{0}', space=sflag, size = 0x4, scoped, tag = 'scoped memory for tpu_custom_call.1']
    #allocation10 [shape = 'u8[8192]{0}', space=vmem, size = 0x2000, scoped, tag = 'output window, operand 0, single buffered']
    #allocation11 [shape = 'u8[8192]{0}', space=vmem, size = 0x2000, scoped, tag = 'output window, operand 1, single buffered']
    #allocation12 [shape = 's32[1]{0}', space=sflag, size = 0x4, scoped, tag = 'scoped memory for tpu_custom_call.1']
    #allocation13 [shape = 'u8[8192]{0}', space=vmem, size = 0x2000, scoped, tag = 'output window, operand 2, single buffered']
    %15 = vsyncpa [#allocation3], 0
    %16 = vsyncpa [#allocation6], 0
    %17 = vsyncpa [#allocation9], 0
    %18 = vsyncpa [#allocation4], 0
    %19 = vsyncpa [#allocation12], 0
    // Predicated region
    $region2: #{tpu_custom_call.1} parent=1 // pred_check
      _
    $region3: #{tpu_custom_call.1} parent=1 // pred_check_branch
      %21 = sbr.rel (0) target = $region5
    $region4: #{tpu_custom_call.1} parent=1 // pred_region
      %23 = vsyncadd [#allocation3], 0
      %s24 = sshll.u32 %s0, 4
      %s25 = int_to_ptr.hbm [resolvable:$true] %s24
      %s26 = sshll.u32 [#allocation2], 4
      %s27 = int_to_ptr.vmem [resolvable:$true] %s26
      %32 = dma.hbm_to_vmem [thread:$0]  %s25, 256, %s27, [#allocation3], 128, 128, 8
    $region5: #{tpu_custom_call.1} parent=1 // pred_fallthru
      _
    // Predicated region
    $region6: #{tpu_custom_call.1} parent=1 // pred_check
      _
    $region7: #{tpu_custom_call.1} parent=1 // pred_check_branch
      %34 = sbr.rel (0) target = $region9
    $region8: #{tpu_custom_call.1} parent=1 // pred_region
      %36 = vsyncadd [#allocation6], 0
      %s37 = sshll.u32 %s1, 4
      %s38 = int_to_ptr.hbm [resolvable:$true] %s37
      %s39 = sshll.u32 [#allocation5], 4
      %s40 = int_to_ptr.vmem [resolvable:$true] %s39
      %45 = dma.hbm_to_vmem [thread:$0]  %s38, 512, %s40, [#allocation6], 128, 128, 8
    $region9: #{tpu_custom_call.1} parent=1 // pred_fallthru
      _
    // Predicated region
    $region10: #{tpu_custom_call.1} parent=1 // pred_check
      _
    $region11: #{tpu_custom_call.1} parent=1 // pred_check_branch
      %47 = sbr.rel (0) target = $region13
    $region12: #{tpu_custom_call.1} parent=1 // pred_region
      _
    $region13: #{tpu_custom_call.1} parent=1 // pred_fallthru
      _
    // Predicated region
    $region14: #{tpu_custom_call.1} parent=1 // pred_check
      _
    $region15: #{tpu_custom_call.1} parent=1 // pred_check_branch
      %49 = sbr.rel (0) target = $region17
    $region16: #{tpu_custom_call.1} parent=1 // pred_region
      %51 = vsyncadd [#allocation6], 0
      %s52 = sshll.u32 %s3, 4
      %s53 = int_to_ptr.hbm [resolvable:$true] %s52
      %s54 = sshll.u32 [#allocation7], 4
      %s55 = int_to_ptr.vmem [resolvable:$true] %s54
      %60 = dma.hbm_to_vmem [thread:$0]  %s53, 512, %s55, [#allocation6], 128, 128, 8
    $region17: #{tpu_custom_call.1} parent=1 // pred_fallthru
      _
    // Predicated region
    $region18: #{tpu_custom_call.1} parent=1 // pred_check
      _
    $region19: #{tpu_custom_call.1} parent=1 // pred_check_branch
      %62 = sbr.rel (0) target = $region21
    $region20: #{tpu_custom_call.1} parent=1 // pred_region
      _
    $region21: #{tpu_custom_call.1} parent=1 // pred_fallthru
      _
    // Predicated region
    $region22: #{tpu_custom_call.1} parent=1 // pred_check
      _
    $region23: #{tpu_custom_call.1} parent=1 // pred_check_branch
      %64 = sbr.rel (0) target = $region25
    $region24: #{tpu_custom_call.1} parent=1 // pred_region
      %66 = vsyncadd [#allocation9], 0
      %s67 = sshll.u32 %s5, 4
      %s68 = int_to_ptr.hbm [resolvable:$true] %s67
      %s69 = sshll.u32 [#allocation8], 4
      %s70 = int_to_ptr.vmem [resolvable:$true] %s69
      %75 = dma.hbm_to_vmem [thread:$0]  %s68, 512, %s70, [#allocation9], 128, 128, 8
    $region25: #{tpu_custom_call.1} parent=1 // pred_fallthru
      _
    // Predicated region
    $region26: #{tpu_custom_call.1} parent=1 // pred_check
      _
    $region27: #{tpu_custom_call.1} parent=1 // pred_check_branch
      %77 = sbr.rel (0) target = $region29
    $region28: #{tpu_custom_call.1} parent=1 // pred_region
      _
    $region29: #{tpu_custom_call.1} parent=1 // pred_fallthru
      _
    // Predicated region
    $region30: #{tpu_custom_call.1} parent=1 // pred_check
      _
    $region31: #{tpu_custom_call.1} parent=1 // pred_check_branch
      %79 = sbr.rel (0) target = $region33
    $region32: #{tpu_custom_call.1} parent=1 // pred_region
      %81 = dma.done [#allocation3], 256
    $region33: #{tpu_custom_call.1} parent=1 // pred_fallthru
      _
    // Predicated region
    $region34: #{tpu_custom_call.1} parent=1 // pred_check
      _
    $region35: #{tpu_custom_call.1} parent=1 // pred_check_branch
      %83 = sbr.rel (0) target = $region37
    $region36: #{tpu_custom_call.1} parent=1 // pred_region
      %85 = dma.done [#allocation6], 512
    $region37: #{tpu_custom_call.1} parent=1 // pred_fallthru
      _
    // Predicated region
    $region38: #{tpu_custom_call.1} parent=1 // pred_check
      _
    $region39: #{tpu_custom_call.1} parent=1 // pred_check_branch
      %87 = sbr.rel (0) target = $region41
    $region40: #{tpu_custom_call.1} parent=1 // pred_region
      %89 = dma.done [#allocation6], 512
    $region41: #{tpu_custom_call.1} parent=1 // pred_fallthru
      _
    // Predicated region
    $region42: #{tpu_custom_call.1} parent=1 // pred_check
      _
    $region43: #{tpu_custom_call.1} parent=1 // pred_check_branch
      %91 = sbr.rel (0) target = $region45
    $region44: #{tpu_custom_call.1} parent=1 // pred_region
      %93 = dma.done [#allocation9], 512
    $region45: #{tpu_custom_call.1} parent=1 // pred_fallthru
      _
    %v94 = vld [vmem:[#allocation2] sm:$0xff]
    %v95 = vld [vmem:[#allocation2 + $0x8] sm:$0xff]
    %v96 = vld [vmem:[#allocation5] sm:$0xff]
    %v97 = vld [vmem:[#allocation5 + $0x8] sm:$0xff]
    %v98 = vld [vmem:[#allocation5 + $0x10] sm:$0xff]
    %v99 = vld [vmem:[#allocation5 + $0x18] sm:$0xff]
    %v100 = vld [vmem:[%s2] sm:$0x1]
    %v102 = vperm.slane %v100, 0
    %vm104 = vcmask 261120
    %v106 = vsel %vm104, %v94, 0
    %v109 = vsel %vm104, %v95, 0
    %111 = vmatpush.msra.mxu0 0.0
    %112 = vmatpush.msra.mxu0 0.0
    %113 = vmatpush.msra.mxu0 0.0
    %114 = vmatpush.msra.mxu0 0.0
    %115 = vmatpush.msra.mxu0 0.0
    %116 = vmatpush.msra.mxu0 0.0
    %117 = vmatpush.msra.mxu0 0.0
    %118 = vmatpush.msra.mxu0 0.0
    %119 = vmatpush.msra.mxu0 0.0
    %120 = vmatpush.msra.mxu0 0.0
    %121 = vmatpush.msra.mxu0 0.0
    %122 = vmatpush.msra.mxu0 0.0
    %123 = vmatpush.msra.mxu0 %v99
    %124 = vmatpush.msra.mxu0 %v98
    %125 = vmatpush.msra.mxu0 %v97
    %126 = vmatpush.msra.mxu0 %v96
    %127 = vmatmul.f32.gmra.mxu0 %v106
    %v128 = vpop.f32.mrf.mxu0
    %v129 = vadd.f32 %v102, %v128
    %130 = vmatmul.f32.gmra.mxu0 %v109
    %v131 = vpop.f32.mrf.mxu0
    %v132 = vadd.f32 %v102, %v131
    %133 = vdwg.mxu0
    %v134 = vmul.f32 %v129, 0.35355338
    %v135 = vmul.f32 %v132, 0.35355338
    %136 = vst.msk [vmem:[#allocation10] sm:$0xff] %vm104, %v134
    %137 = vst.msk [vmem:[#allocation10 + $0x8] sm:$0xff] %vm104, %v135
    %v138 = vld [vmem:[#allocation7] sm:$0xff]
    %v139 = vld [vmem:[#allocation7 + $0x8] sm:$0xff]
    %v140 = vld [vmem:[#allocation7 + $0x10] sm:$0xff]
    %v141 = vld [vmem:[#allocation7 + $0x18] sm:$0xff]
    %v142 = vld [vmem:[%s4] sm:$0x1]
    %v144 = vperm.slane %v142, 0
    %146 = vmatpush.msra.mxu0 0.0
    %147 = vmatpush.msra.mxu0 0.0
    %148 = vmatpush.msra.mxu0 0.0
    %149 = vmatpush.msra.mxu0 0.0
    %150 = vmatpush.msra.mxu0 0.0
    %151 = vmatpush.msra.mxu0 0.0
    %152 = vmatpush.msra.mxu0 0.0
    %153 = vmatpush.msra.mxu0 0.0
    %154 = vmatpush.msra.mxu0 0.0
    %155 = vmatpush.msra.mxu0 0.0
    %156 = vmatpush.msra.mxu0 0.0
    %157 = vmatpush.msra.mxu0 0.0
    %158 = vmatpush.msra.mxu0 %v141
    %159 = vmatpush.msra.mxu0 %v140
    %160 = vmatpush.msra.mxu0 %v139
    %161 = vmatpush.msra.mxu0 %v138
    %162 = vmatmul.f32.gmra.mxu0 %v106
    %v163 = vpop.f32.mrf.mxu0
    %v164 = vadd.f32 %v144, %v163
    %165 = vmatmul.f32.gmra.mxu0 %v109
    %v166 = vpop.f32.mrf.mxu0
    %v167 = vadd.f32 %v144, %v166
    %168 = vdwg.mxu0
    %169 = vst.msk [vmem:[#allocation11] sm:$0xff] %vm104, %v164
    %170 = vst.msk [vmem:[#allocation11 + $0x8] sm:$0xff] %vm104, %v167
    %v171 = vld [vmem:[#allocation8] sm:$0xff]
    %v172 = vld [vmem:[#allocation8 + $0x8] sm:$0xff]
    %v173 = vld [vmem:[#allocation8 + $0x10] sm:$0xff]
    %v174 = vld [vmem:[#allocation8 + $0x18] sm:$0xff]
    %v175 = vld [vmem:[%s6] sm:$0x1]
    %v177 = vperm.slane %v175, 0
    %179 = vmatpush.msra.mxu0 0.0
    %180 = vmatpush.msra.mxu0 0.0
    %181 = vmatpush.msra.mxu0 0.0
    %182 = vmatpush.msra.mxu0 0.0
    %183 = vmatpush.msra.mxu0 0.0
    %184 = vmatpush.msra.mxu0 0.0
    %185 = vmatpush.msra.mxu0 0.0
    %186 = vmatpush.msra.mxu0 0.0
    %187 = vmatpush.msra.mxu0 0.0
    %188 = vmatpush.msra.mxu0 0.0
    %189 = vmatpush.msra.mxu0 0.0
    %190 = vmatpush.msra.mxu0 0.0
    %191 = vmatpush.msra.mxu0 %v174
    %192 = vmatpush.msra.mxu0 %v173
    %193 = vmatpush.msra.mxu0 %v172
    %194 = vmatpush.msra.mxu0 %v171
    %195 = vmatmul.f32.gmra.mxu0 %v106
    %v196 = vpop.f32.mrf.mxu0
    %v197 = vadd.f32 %v177, %v196
    %198 = vmatmul.f32.gmra.mxu0 %v109
    %v199 = vpop.f32.mrf.mxu0
    %v200 = vadd.f32 %v177, %v199
    %201 = vdwg.mxu0
    %202 = vst.msk [vmem:[#allocation13] sm:$0xff] %vm104, %v197
    %203 = vst.msk [vmem:[#allocation13 + $0x8] sm:$0xff] %vm104, %v200
    // Predicated region
    $region46: #{tpu_custom_call.1} parent=1 // pred_check
      _
    $region47: #{tpu_custom_call.1} parent=1 // pred_check_branch
      %205 = sbr.rel (0) target = $region49
    $region48: #{tpu_custom_call.1} parent=1 // pred_region
      %207 = vsyncadd [#allocation4], 0
      %s208 = sshll.u32 [#allocation10], 4
      %s209 = int_to_ptr.vmem [resolvable:$true] %s208
      %s210 = sshll.u32 %s7, 4
      %s211 = int_to_ptr.hbm [resolvable:$true] %s210
      %216 = dma.vmem_to_hbm [thread:$0]  %s209, 256, %s211, [#allocation4], 128, 128, 8
    $region49: #{tpu_custom_call.1} parent=1 // pred_fallthru
      _
    // Predicated region
    $region50: #{tpu_custom_call.1} parent=1 // pred_check
      _
    $region51: #{tpu_custom_call.1} parent=1 // pred_check_branch
      %218 = sbr.rel (0) target = $region53
    $region52: #{tpu_custom_call.1} parent=1 // pred_region
      %220 = vsyncadd [#allocation12], 0
      %s221 = sshll.u32 [#allocation11], 4
      %s222 = int_to_ptr.vmem [resolvable:$true] %s221
      %s223 = sshll.u32 %s8, 4
      %s224 = int_to_ptr.hbm [resolvable:$true] %s223
      %229 = dma.vmem_to_hbm [thread:$0]  %s222, 256, %s224, [#allocation12], 128, 128, 8
    $region53: #{tpu_custom_call.1} parent=1 // pred_fallthru
      _
    // Predicated region
    $region54: #{tpu_custom_call.1} parent=1 // pred_check
      _
    $region55: #{tpu_custom_call.1} parent=1 // pred_check_branch
      %231 = sbr.rel (0) target = $region57
    $region56: #{tpu_custom_call.1} parent=1 // pred_region
      %233 = vsyncadd [#allocation12], 0
      %s234 = sshll.u32 [#allocation13], 4
      %s235 = int_to_ptr.vmem [resolvable:$true] %s234
      %s236 = sshll.u32 %s9, 4
      %s237 = int_to_ptr.hbm [resolvable:$true] %s236
      %242 = dma.vmem_to_hbm [thread:$0]  %s235, 256, %s237, [#allocation12], 128, 128, 8
    $region57: #{tpu_custom_call.1} parent=1 // pred_fallthru
      _
    // Predicated region
    $region58: #{tpu_custom_call.1} parent=1 // pred_check
      _
    $region59: #{tpu_custom_call.1} parent=1 // pred_check_branch
      %244 = sbr.rel (0) target = $region61
    $region60: #{tpu_custom_call.1} parent=1 // pred_region
      %246 = dma.done [#allocation4], 256
    $region61: #{tpu_custom_call.1} parent=1 // pred_fallthru
      _
    // Predicated region
    $region62: #{tpu_custom_call.1} parent=1 // pred_check
      _
    $region63: #{tpu_custom_call.1} parent=1 // pred_check_branch
      %248 = sbr.rel (0) target = $region65
    $region64: #{tpu_custom_call.1} parent=1 // pred_region
      %250 = dma.done [#allocation12], 256
    $region65: #{tpu_custom_call.1} parent=1 // pred_fallthru
      _
    // Predicated region
    $region66: #{tpu_custom_call.1} parent=1 // pred_check
      _
    $region67: #{tpu_custom_call.1} parent=1 // pred_check_branch
      %252 = sbr.rel (0) target = $region69
    $region68: #{tpu_custom_call.1} parent=1 // pred_region
      %254 = dma.done [#allocation12], 256
    $region69: #{tpu_custom_call.1} parent=1 // pred_fallthru
      _
    %255 = vsyncpa [#allocation3], 1
    %256 = vsyncpa [#allocation6], 1
    %257 = vsyncpa [#allocation9], 1
    %258 = vsyncpa [#allocation4], 1
    %259 = vsyncpa [#allocation12], 1

</llo_original>
